<compile_context>
chip_gen: v5e
topology: v5e:2x2
jax: 0.10.0
libtpu: 0.0.40
codegen_flags: <defaults>
</compile_context>

<pallas_src>
import functools

import jax
import jax.numpy as jnp
from jax.experimental import pallas as pl
from jax.experimental.pallas import tpu as pltpu


def _round_up(x, m):
    return (x + m - 1) // m * m


def _disease_kernel(xin_ref, w1_ref, b1_ref, w2_ref, b2_ref, o_ref, *, hidden):
    # Layer 1 (transposed): h_t = W1_aug_T @ xin_t -> (z_pad, tb), f32 acc.
    # W1_aug_T also carries identity rows that pass the discrete features
    # through to rows [h_pad, z_pad), so no concatenate is needed afterwards.
    h = jnp.dot(w1_ref[...], xin_ref[...], preferred_element_type=jnp.float32)
    h = h + b1_ref[...]
    # ReLU only on the true hidden rows; rows [hidden, h_pad) are zero padding
    # (ReLU is a no-op there) and rows [h_pad, z_pad) are the pass-through
    # discrete features, which must NOT be clipped.  Constant row mask -> VPU.
    row = jax.lax.broadcasted_iota(jnp.int32, h.shape, 0)
    z = jnp.where(row < hidden, jnp.maximum(h, 0.0), h)
    # Layer 2 (transposed): out_t = W2_T @ z -> (out_size, tb), lane-dense.
    out = jnp.dot(w2_ref[...], z, preferred_element_type=jnp.float32)
    o_ref[...] = (out + b2_ref[...]).astype(o_ref.dtype)


def disease_model_forward(x, other_features, w1, b1, w2, b2, *,
                          block_batch=4096, matmul_dtype=None):
    """Fused DiseaseModel forward.

    x: [B, input_size], other_features: [B, n_discrete]
    w1: [input_size, hidden], b1: [hidden]        (math layout, i.e. W1.T)
    w2: [hidden + n_discrete, output], b2: [output]
    Returns [B, output] in x's dtype.
    """
    B, input_size = x.shape
    _, n_discrete = other_features.shape
    hidden = w1.shape[1]
    out_size = w2.shape[1]
    out_dtype = x.dtype

    in_dim = input_size + n_discrete
    z_pad = _round_up(hidden + n_discrete, 128)   # 64 + 8 -> 128
    h_pad = z_pad - n_discrete                    # -> 120

    compute_dtype = (jnp.dtype(matmul_dtype) if matmul_dtype is not None
                     else jnp.dtype(x.dtype))

    # ---- merged + transposed streaming input (one DMA stream, batch on lanes)
    xin_t = jnp.concatenate(
        [x, other_features.astype(x.dtype)], axis=1).astype(compute_dtype).T

    # ---- weight prep (layout plumbing only; zero padding is exact) ----------
    # Augmented, transposed first-layer weight (z_pad, in_dim):
    #   rows [0:hidden]   x cols [0:input_size] = W1.T
    #   rows [h_pad:]     x cols [input_size:]  = I  (discrete pass-through)
    w1t = jnp.zeros((z_pad, in_dim), compute_dtype)
    w1t = w1t.at[:hidden, :input_size].set(w1.T.astype(compute_dtype))
    w1t = w1t.at[h_pad:, input_size:].set(jnp.eye(n_discrete, dtype=compute_dtype))

    b1_col = jnp.zeros((z_pad, 1), jnp.float32).at[:hidden, 0].set(
        b1.astype(jnp.float32))

    # Fused, transposed second-layer weight (out_size, z_pad); kept in f32
    # (tiny, resident, second matmul cost is negligible).
    w2t = jnp.zeros((out_size, z_pad), jnp.float32)
    w2t = w2t.at[:, :hidden].set(w2[:hidden, :].T.astype(jnp.float32))
    w2t = w2t.at[:, h_pad:].set(w2[hidden:, :].T.astype(jnp.float32))
    b2_col = b2.reshape(out_size, 1).astype(jnp.float32)

    # ---- batch (lane) tiling ------------------------------------------------
    # tb is a multiple of 128 (lane-dense blocks for input and output), capped
    # at ~B/2 so both v7x TensorCores get work; if one tile covers the whole
    # batch, use exactly B (full-dim blocks are always legal).
    half = _round_up(pl.cdiv(B, 2), 128)
    tb = _round_up(min(block_batch, half), 128)
    if tb >= B:
        tb = B
    grid = (pl.cdiv(B, tb),)

    cost = pl.CostEstimate(
        flops=2 * B * z_pad * (in_dim + out_size),
        transcendentals=0,
        bytes_accessed=int(
            xin_t.size * xin_t.dtype.itemsize
            + w1t.size * w1t.dtype.itemsize
            + (b1_col.size + w2t.size + b2_col.size) * 4
            + B * out_size * jnp.dtype(out_dtype).itemsize),
    )

    kernel = functools.partial(_disease_kernel, hidden=hidden)

    out_t = pl.pallas_call(
        kernel,
        out_shape=jax.ShapeDtypeStruct((out_size, B), out_dtype),
        grid=grid,
        in_specs=[
            pl.BlockSpec((in_dim, tb), lambda i: (0, i)),       # merged input
            pl.BlockSpec((z_pad, in_dim), lambda i: (0, 0)),    # W1 aug (res.)
            pl.BlockSpec((z_pad, 1), lambda i: (0, 0)),         # b1 (resident)
            pl.BlockSpec((out_size, z_pad), lambda i: (0, 0)),  # W2.T (res.)
            pl.BlockSpec((out_size, 1), lambda i: (0, 0)),      # b2 (resident)
        ],
        out_specs=pl.BlockSpec((out_size, tb), lambda i: (0, i)),
        compiler_params=pltpu.CompilerParams(
            dimension_semantics=("parallel",),
            vmem_limit_bytes=32 * 1024 * 1024),
        cost_estimate=cost,
    )(xin_t, w1t, b1_col, w2t, b2_col)

    return out_t.T   # back to (B, out_size)


if __name__ == "__main__":
    # Shapes implied by the module: input_size = max tokenized-disease length
    # (pick 16), hidden = 64, n_discrete = len(discrete_features) = 8,
    # output_size = 2.
    input_size, hidden_size, n_discrete, output_size = 16, 64, 8, 2

    key = jax.random.PRNGKey(0)
    kx, ko, kw1, kb1, kw2, kb2 = jax.random.split(key, 6)

    w1 = jax.random.normal(kw1, (input_size, hidden_size), jnp.float32) * 0.1
    b1 = jax.random.normal(kb1, (hidden_size,), jnp.float32) * 0.1
    w2 = jax.random.normal(kw2, (hidden_size + n_discrete, output_size),
                           jnp.float32) * 0.1
    b2 = jax.random.normal(kb2, (output_size,), jnp.float32) * 0.1

    def reference(xx, oo):
        h = jnp.maximum(xx @ w1 + b1, 0.0)
        return jnp.concatenate([h, oo], axis=1) @ w2 + b2

    # Case 1: tiny batch, f32, single grid step, tight check.
    batch = 8
    x = jax.random.normal(kx, (batch, input_size), jnp.float32)
    other = jax.random.normal(ko, (batch, n_discrete), jnp.float32)
    out = jax.block_until_ready(disease_model_forward(x, other, w1, b1, w2, b2))
    assert out.shape == (batch, output_size)
    assert jnp.allclose(out, reference(x, other), atol=1e-4, rtol=1e-4)

    # Case 2: multi-step grid (4 steps) + bf16 matmul operands (coverage of the
    # narrow-dtype path; looser tolerance for bf16 rounding of x/other).
    batch = 512
    x = jax.random.normal(kx, (batch, input_size), jnp.float32)
    other = jax.random.normal(ko, (batch, n_discrete), jnp.float32)
    out = jax.block_until_ready(
        disease_model_forward(x, other, w1, b1, w2, b2,
                              block_batch=128, matmul_dtype=jnp.bfloat16))
    assert out.shape == (batch, output_size)
    assert jnp.allclose(out, reference(x, other), atol=3e-2, rtol=3e-2)

    print("KERNEL_OK")
</pallas_src>

<mosaic_0001>
module attributes {stable_mosaic.version = 11 : i64} {
  func.func @_disease_kernel(%arg0: i32, %arg1: memref<24x8xf32, #tpu.memory_space<vmem>>, %arg2: memref<128x24xf32, #tpu.memory_space<vmem>>, %arg3: memref<128x1xf32, #tpu.memory_space<vmem>>, %arg4: memref<2x128xf32, #tpu.memory_space<vmem>>, %arg5: memref<2x1xf32, #tpu.memory_space<vmem>>, %arg6: memref<2x8xf32, #tpu.memory_space<vmem>>) attributes {dimension_semantics = [#tpu.dimension_semantics<parallel>], iteration_bounds = array<i64: 1>, scalar_prefetch = 0 : i64, scratch_operands = 0 : i64, tpu.core_type = #tpu.core_type<tc>, window_params = [{transform_indices = @transform_0, window_bounds = array<i64: 24, 8>}, {pipeline_mode = #tpu.pipeline_mode<synchronous>, transform_indices = @transform_1, window_bounds = array<i64: 128, 24>}, {pipeline_mode = #tpu.pipeline_mode<synchronous>, transform_indices = @transform_2, window_bounds = array<i64: 128, 1>}, {pipeline_mode = #tpu.pipeline_mode<synchronous>, transform_indices = @transform_3, window_bounds = array<i64: 2, 128>}, {pipeline_mode = #tpu.pipeline_mode<synchronous>, transform_indices = @transform_4, window_bounds = array<i64: 2, 1>}, {transform_indices = @transform_5, window_bounds = array<i64: 2, 8>}]} {
    %c0 = arith.constant 0 : index
    %c0_0 = arith.constant 0 : index
    %0 = vector.load %arg2[%c0, %c0_0] : memref<128x24xf32, #tpu.memory_space<vmem>>, vector<128x24xf32>
    %c0_1 = arith.constant 0 : index
    %c0_2 = arith.constant 0 : index
    %1 = vector.load %arg1[%c0_1, %c0_2] : memref<24x8xf32, #tpu.memory_space<vmem>>, vector<24x8xf32>
    %cst = arith.constant dense<0.000000e+00> : vector<128x8xf32>
    %2 = tpu.matmul %0, %1, %cst {dimension_numbers = #tpu.dot_dimension_numbers<[1], [0], [0], [1], [0, 0, 1, 1], [], []>} : vector<128x24xf32>, vector<24x8xf32>, vector<128x8xf32> -> vector<128x8xf32>
    %c0_3 = arith.constant 0 : index
    %c0_4 = arith.constant 0 : index
    %3 = vector.load %arg3[%c0_3, %c0_4] : memref<128x1xf32, #tpu.memory_space<vmem>>, vector<128x1xf32>
    %4 = vector.broadcast %3 : vector<128x1xf32> to vector<128x8xf32>
    %5 = arith.addf %2, %4 : vector<128x8xf32>
    %6 = tpu.iota {dimensions = array<i32: 0>} : vector<128x8xi32>
    %c64_i32 = arith.constant 64 : i32
    %7 = vector.broadcast %c64_i32 : i32 to vector<128x8xi32>
    %8 = arith.cmpi slt, %6, %7 : vector<128x8xi32>
    %cst_5 = arith.constant 0.000000e+00 : f32
    %9 = vector.broadcast %cst_5 : f32 to vector<128x8xf32>
    %10 = arith.maximumf %5, %9 : vector<128x8xf32>
    %11 = arith.select %8, %10, %5 : vector<128x8xi1>, vector<128x8xf32>
    %c0_6 = arith.constant 0 : index
    %c0_7 = arith.constant 0 : index
    %12 = vector.load %arg4[%c0_6, %c0_7] : memref<2x128xf32, #tpu.memory_space<vmem>>, vector<2x128xf32>
    %cst_8 = arith.constant dense<0.000000e+00> : vector<2x8xf32>
    %13 = tpu.matmul %12, %11, %cst_8 {dimension_numbers = #tpu.dot_dimension_numbers<[1], [0], [0], [1], [0, 0, 1, 1], [], []>} : vector<2x128xf32>, vector<128x8xf32>, vector<2x8xf32> -> vector<2x8xf32>
    %c0_9 = arith.constant 0 : index
    %c0_10 = arith.constant 0 : index
    %14 = vector.load %arg5[%c0_9, %c0_10] : memref<2x1xf32, #tpu.memory_space<vmem>>, vector<2x1xf32>
    %15 = vector.broadcast %14 : vector<2x1xf32> to vector<2x8xf32>
    %16 = arith.addf %13, %15 : vector<2x8xf32>
    %c0_11 = arith.constant 0 : index
    %c0_12 = arith.constant 0 : index
    %17 = vector.load %arg6[%c0_11, %c0_12] : memref<2x8xf32, #tpu.memory_space<vmem>>, vector<2x8xf32>
    tpu.vector_store %arg6[%c0_11, %c0_12], %16 {strides = array<i32>} : memref<2x8xf32, #tpu.memory_space<vmem>>, vector<2x8xf32>,
    return
  }
  func.func @transform_0(%arg0: i32) -> (i32, i32) {
    %c0_i32 = arith.constant 0 : i32
    %c0_i32_0 = arith.constant 0 : i32
    return %c0_i32, %arg0 : i32, i32
  }
  func.func @transform_1(%arg0: i32) -> (i32, i32) {
    %c0_i32 = arith.constant 0 : i32
    %c0_i32_0 = arith.constant 0 : i32
    %c0_i32_1 = arith.constant 0 : i32
    return %c0_i32, %c0_i32_0 : i32, i32
  }
  func.func @transform_2(%arg0: i32) -> (i32, i32) {
    %c0_i32 = arith.constant 0 : i32
    %c0_i32_0 = arith.constant 0 : i32
    %c0_i32_1 = arith.constant 0 : i32
    return %c0_i32, %c0_i32_0 : i32, i32
  }
  func.func @transform_3(%arg0: i32) -> (i32, i32) {
    %c0_i32 = arith.constant 0 : i32
    %c0_i32_0 = arith.constant 0 : i32
    %c0_i32_1 = arith.constant 0 : i32
    return %c0_i32, %c0_i32_0 : i32, i32
  }
  func.func @transform_4(%arg0: i32) -> (i32, i32) {
    %c0_i32 = arith.constant 0 : i32
    %c0_i32_0 = arith.constant 0 : i32
    %c0_i32_1 = arith.constant 0 : i32
    return %c0_i32, %c0_i32_0 : i32, i32
  }
  func.func @transform_5(%arg0: i32) -> (i32, i32) {
    %c0_i32 = arith.constant 0 : i32
    %c0_i32_0 = arith.constant 0 : i32
    return %c0_i32, %arg0 : i32, i32
  }
}

</mosaic_0001>

<llo_original>
// kernel: tpu_custom_call.1
$region0: #{tpu_custom_call.1}
  #allocation0 [shape = 'u32[]', space=smem, size = 0x4, offset = 0x4, fixed_abs, tag = 'smem constant byte address 0x4 - core index']
  #allocation1 [shape = 'u32[72,128]{1,0:T(1,128)}', space=vmem, size = 0x9000, scoped, tag = 'internal scratch']
  %s0 = inlined_call_operand.vmem [shape: f32[24,8], index: 0, kind: input, shape index: {}]
  %s1 = inlined_call_operand.vmem [shape: f32[128,24], index: 1, kind: input, shape index: {}]
  %s2 = inlined_call_operand.vmem [shape: f32[128,1], index: 2, kind: input, shape index: {}]
  %s3 = inlined_call_operand.vmem [shape: f32[2,128], index: 3, kind: input, shape index: {}]
  %s4 = inlined_call_operand.vmem [shape: f32[2,1], index: 4, kind: input, shape index: {}]
  %s5 = inlined_call_operand.hbm [shape: f32[2,8], index: 5, kind: output, shape index: {}]
  %s6 = sld [smem:[#allocation0]]
  $region30: #{tpu_custom_call.1} parent=0
    _
  %s8 = ssub.s32 1, %s6
  %s9 = scalar_select 0, %s8, %s6
  $region1: #{tpu_custom_call.1} parent=0
    #allocation2 [shape = 'u8[1024]{0}', space=vmem, size = 0x400, scoped, tag = 'output window, operand 0, single buffered']
    #allocation3 [shape = 's32[1]{0}', space=sflag, size = 0x4, scoped, tag = 'scoped memory for tpu_custom_call.1']
    %10 = vsyncpa [#allocation3], 0
    // Predicated region
    $region2: #{tpu_custom_call.1} parent=1 // pred_check
      _
    $region3: #{tpu_custom_call.1} parent=1 // pred_check_branch
      %12 = sbr.rel (0) target = $region5
    $region4: #{tpu_custom_call.1} parent=1 // pred_region
      _
    $region5: #{tpu_custom_call.1} parent=1 // pred_fallthru
      _
    // Predicated region
    $region6: #{tpu_custom_call.1} parent=1 // pred_check
      _
    $region7: #{tpu_custom_call.1} parent=1 // pred_check_branch
      %14 = sbr.rel (0) target = $region9
    $region8: #{tpu_custom_call.1} parent=1 // pred_region
      _
    $region9: #{tpu_custom_call.1} parent=1 // pred_fallthru
      _
    // Predicated region
    $region10: #{tpu_custom_call.1} parent=1 // pred_check
      _
    $region11: #{tpu_custom_call.1} parent=1 // pred_check_branch
      %16 = sbr.rel (0) target = $region13
    $region12: #{tpu_custom_call.1} parent=1 // pred_region
      _
    $region13: #{tpu_custom_call.1} parent=1 // pred_fallthru
      _
    // Predicated region
    $region14: #{tpu_custom_call.1} parent=1 // pred_check
      _
    $region15: #{tpu_custom_call.1} parent=1 // pred_check_branch
      %18 = sbr.rel (0) target = $region17
    $region16: #{tpu_custom_call.1} parent=1 // pred_region
      _
    $region17: #{tpu_custom_call.1} parent=1 // pred_fallthru
      _
    // Predicated region
    $region18: #{tpu_custom_call.1} parent=1 // pred_check
      _
    $region19: #{tpu_custom_call.1} parent=1 // pred_check_branch
      %20 = sbr.rel (0) target = $region21
    $region20: #{tpu_custom_call.1} parent=1 // pred_region
      _
    $region21: #{tpu_custom_call.1} parent=1 // pred_fallthru
      _
    %v21 = vld [vmem:[%s1] sm:$0xff]
    %v22 = vld [vmem:[%s1 + $0x8] sm:$0xff]
    %v23 = vld [vmem:[%s1 + $0x10] sm:$0xff]
    %v24 = vld [vmem:[%s1 + $0x18] sm:$0xff]
    %v25 = vld [vmem:[%s1 + $0x20] sm:$0xff]
    %v26 = vld [vmem:[%s1 + $0x28] sm:$0xff]
    %v27 = vld [vmem:[%s1 + $0x30] sm:$0xff]
    %v28 = vld [vmem:[%s1 + $0x38] sm:$0xff]
    %v29 = vld [vmem:[%s1 + $0x40] sm:$0xff]
    %v30 = vld [vmem:[%s1 + $0x48] sm:$0xff]
    %v31 = vld [vmem:[%s1 + $0x50] sm:$0xff]
    %v32 = vld [vmem:[%s1 + $0x58] sm:$0xff]
    %v33 = vld [vmem:[%s1 + $0x60] sm:$0xff]
    %v34 = vld [vmem:[%s1 + $0x68] sm:$0xff]
    %v35 = vld [vmem:[%s1 + $0x70] sm:$0xff]
    %v36 = vld [vmem:[%s1 + $0x78] sm:$0xff]
    %v37 = vld [vmem:[%s0] sm:$0xff]
    %v38 = vld [vmem:[%s0 + $0x8] sm:$0xff]
    %v39 = vld [vmem:[%s0 + $0x10] sm:$0xff]
    %v40 = vld [vmem:[%s2] sm:$0xff]
    %v41 = vld [vmem:[%s2 + $0x8] sm:$0xff]
    %v42 = vld [vmem:[%s2 + $0x10] sm:$0xff]
    %v43 = vld [vmem:[%s2 + $0x18] sm:$0xff]
    %v44 = vld [vmem:[%s2 + $0x20] sm:$0xff]
    %v45 = vld [vmem:[%s2 + $0x28] sm:$0xff]
    %v46 = vld [vmem:[%s2 + $0x30] sm:$0xff]
    %v47 = vld [vmem:[%s2 + $0x38] sm:$0xff]
    %v48 = vld [vmem:[%s2 + $0x40] sm:$0xff]
    %v49 = vld [vmem:[%s2 + $0x48] sm:$0xff]
    %v50 = vld [vmem:[%s2 + $0x50] sm:$0xff]
    %v51 = vld [vmem:[%s2 + $0x58] sm:$0xff]
    %v52 = vld [vmem:[%s2 + $0x60] sm:$0xff]
    %v53 = vld [vmem:[%s2 + $0x68] sm:$0xff]
    %v54 = vld [vmem:[%s2 + $0x70] sm:$0xff]
    %v55 = vld [vmem:[%s2 + $0x78] sm:$0xff]
    %57 = vset.pattern.permute.xlu0 0
    %58 = vperm.xlu0 %57, %v40
    %v59 = vpop.permute.xlu0 %58
    %62 = vset.pattern.permute.xlu0 0
    %63 = vperm.xlu0 %62, %v41
    %v64 = vpop.permute.xlu0 %63
    %67 = vset.pattern.permute.xlu0 0
    %68 = vperm.xlu0 %67, %v42
    %v69 = vpop.permute.xlu0 %68
    %72 = vset.pattern.permute.xlu0 0
    %73 = vperm.xlu0 %72, %v43
    %v74 = vpop.permute.xlu0 %73
    %77 = vset.pattern.permute.xlu0 0
    %78 = vperm.xlu0 %77, %v44
    %v79 = vpop.permute.xlu0 %78
    %82 = vset.pattern.permute.xlu0 0
    %83 = vperm.xlu0 %82, %v45
    %v84 = vpop.permute.xlu0 %83
    %87 = vset.pattern.permute.xlu0 0
    %88 = vperm.xlu0 %87, %v46
    %v89 = vpop.permute.xlu0 %88
    %92 = vset.pattern.permute.xlu0 0
    %93 = vperm.xlu0 %92, %v47
    %v94 = vpop.permute.xlu0 %93
    %97 = vset.pattern.permute.xlu0 0
    %98 = vperm.xlu0 %97, %v48
    %v99 = vpop.permute.xlu0 %98
    %102 = vset.pattern.permute.xlu0 0
    %103 = vperm.xlu0 %102, %v49
    %v104 = vpop.permute.xlu0 %103
    %107 = vset.pattern.permute.xlu0 0
    %108 = vperm.xlu0 %107, %v50
    %v109 = vpop.permute.xlu0 %108
    %112 = vset.pattern.permute.xlu0 0
    %113 = vperm.xlu0 %112, %v51
    %v114 = vpop.permute.xlu0 %113
    %117 = vset.pattern.permute.xlu0 0
    %118 = vperm.xlu0 %117, %v52
    %v119 = vpop.permute.xlu0 %118
    %122 = vset.pattern.permute.xlu0 0
    %123 = vperm.xlu0 %122, %v53
    %v124 = vpop.permute.xlu0 %123
    %127 = vset.pattern.permute.xlu0 0
    %128 = vperm.xlu0 %127, %v54
    %v129 = vpop.permute.xlu0 %128
    %132 = vset.pattern.permute.xlu0 0
    %133 = vperm.xlu0 %132, %v55
    %v134 = vpop.permute.xlu0 %133
    %vm136 = vcmask 195584
    %v138 = vsel %vm136, %v21, 0
    %v141 = vsel %vm136, %v22, 0
    %v144 = vsel %vm136, %v23, 0
    %v147 = vsel %vm136, %v24, 0
    %v150 = vsel %vm136, %v25, 0
    %v153 = vsel %vm136, %v26, 0
    %v156 = vsel %vm136, %v27, 0
    %v159 = vsel %vm136, %v28, 0
    %v162 = vsel %vm136, %v29, 0
    %v165 = vsel %vm136, %v30, 0
    %v168 = vsel %vm136, %v31, 0
    %v171 = vsel %vm136, %v32, 0
    %v174 = vsel %vm136, %v33, 0
    %v177 = vsel %vm136, %v34, 0
    %v180 = vsel %vm136, %v35, 0
    %v183 = vsel %vm136, %v36, 0
    %185 = vmatpush.msra.mxu0 0.0
    %186 = vmatpush.msra.mxu0 0.0
    %187 = vmatpush.msra.mxu0 0.0
    %188 = vmatpush.msra.mxu0 0.0
    %189 = vmatpush.msra.mxu0 0.0
    %190 = vmatpush.msra.mxu0 0.0
    %191 = vmatpush.msra.mxu0 0.0
    %192 = vmatpush.msra.mxu0 0.0
    %193 = vmatpush.msra.mxu0 0.0
    %194 = vmatpush.msra.mxu0 0.0
    %195 = vmatpush.msra.mxu0 0.0
    %196 = vmatpush.msra.mxu0 0.0
    %197 = vmatpush.msra.mxu0 0.0
    %198 = vmatpush.msra.mxu0 %v39
    %199 = vmatpush.msra.mxu0 %v38
    %200 = vmatpush.msra.mxu0 %v37
    %201 = vmatmul.f32.gmra.mxu0 %v138
    %v202 = vpop.f32.mrf.mxu0
    %v203 = vadd.f32 %v59, %v202
    %204 = vmatmul.f32.gmra.mxu0 %v141
    %v205 = vpop.f32.mrf.mxu0
    %v206 = vadd.f32 %v64, %v205
    %207 = vmatmul.f32.gmra.mxu0 %v144
    %v208 = vpop.f32.mrf.mxu0
    %v209 = vadd.f32 %v69, %v208
    %210 = vmatmul.f32.gmra.mxu0 %v147
    %v211 = vpop.f32.mrf.mxu0
    %v212 = vadd.f32 %v74, %v211
    %213 = vmatmul.f32.gmra.mxu0 %v150
    %v214 = vpop.f32.mrf.mxu0
    %v215 = vadd.f32 %v79, %v214
    %216 = vmatmul.f32.gmra.mxu0 %v153
    %v217 = vpop.f32.mrf.mxu0
    %v218 = vadd.f32 %v84, %v217
    %219 = vmatmul.f32.gmra.mxu0 %v156
    %v220 = vpop.f32.mrf.mxu0
    %v221 = vadd.f32 %v89, %v220
    %222 = vmatmul.f32.gmra.mxu0 %v159
    %v223 = vpop.f32.mrf.mxu0
    %v224 = vadd.f32 %v94, %v223
    %225 = vmatmul.f32.gmra.mxu0 %v162
    %v226 = vpop.f32.mrf.mxu0
    %v227 = vadd.f32 %v99, %v226
    %228 = vmatmul.f32.gmra.mxu0 %v165
    %v229 = vpop.f32.mrf.mxu0
    %v230 = vadd.f32 %v104, %v229
    %231 = vmatmul.f32.gmra.mxu0 %v168
    %v232 = vpop.f32.mrf.mxu0
    %v233 = vadd.f32 %v109, %v232
    %234 = vmatmul.f32.gmra.mxu0 %v171
    %v235 = vpop.f32.mrf.mxu0
    %v236 = vadd.f32 %v114, %v235
    %237 = vmatmul.f32.gmra.mxu0 %v174
    %v238 = vpop.f32.mrf.mxu0
    %v239 = vadd.f32 %v119, %v238
    %240 = vmatmul.f32.gmra.mxu0 %v177
    %v241 = vpop.f32.mrf.mxu0
    %v242 = vadd.f32 %v124, %v241
    %243 = vmatmul.f32.gmra.mxu0 %v180
    %v244 = vpop.f32.mrf.mxu0
    %v245 = vadd.f32 %v129, %v244
    %246 = vmatmul.f32.gmra.mxu0 %v183
    %v247 = vpop.f32.mrf.mxu0
    %v248 = vadd.f32 %v134, %v247
    %249 = vdwg.mxu0
    %v250 = vlaneseq
    %v251 = vshrl.u32 %v250, 7
    %v252 = vadd.s32 %v251, 8
    %v253 = vadd.s32 %v251, 16
    %v254 = vadd.s32 %v251, 24
    %v255 = vadd.s32 %v251, 32
    %v256 = vadd.s32 %v251, 40
    %v257 = vadd.s32 %v251, 48
    %v258 = vadd.s32 %v251, 56
    %v259 = vadd.s32 %v251, 64
    %v260 = vadd.s32 %v251, 72
    %v261 = vadd.s32 %v251, 80
    %v262 = vadd.s32 %v251, 88
    %v263 = vadd.s32 %v251, 96
    %v264 = vadd.s32 %v251, 104
    %v265 = vadd.s32 %v251, 112
    %v266 = vadd.s32 %v251, 120
    %vm267 = vcmp.lt.s32.totalorder %v251, 64
    %vm268 = vcmp.lt.s32.totalorder %v252, 64
    %vm269 = vcmp.lt.s32.totalorder %v253, 64
    %vm270 = vcmp.lt.s32.totalorder %v254, 64
    %vm271 = vcmp.lt.s32.totalorder %v255, 64
    %vm272 = vcmp.lt.s32.totalorder %v256, 64
    %vm273 = vcmp.lt.s32.totalorder %v257, 64
    %vm274 = vcmp.lt.s32.totalorder %v258, 64
    %vm275 = vcmp.lt.s32.totalorder %v259, 64
    %vm276 = vcmp.lt.s32.totalorder %v260, 64
    %vm277 = vcmp.lt.s32.totalorder %v261, 64
    %vm278 = vcmp.lt.s32.totalorder %v262, 64
    %vm279 = vcmp.lt.s32.totalorder %v263, 64
    %vm280 = vcmp.lt.s32.totalorder %v264, 64
    %vm281 = vcmp.lt.s32.totalorder %v265, 64
    %vm282 = vcmp.lt.s32.totalorder %v266, 64
    %v283 = vmax.f32 %v203, 0.0
    %v284 = vmax.f32 %v206, 0.0
    %v285 = vmax.f32 %v209, 0.0
    %v286 = vmax.f32 %v212, 0.0
    %v287 = vmax.f32 %v215, 0.0
    %v288 = vmax.f32 %v218, 0.0
    %v289 = vmax.f32 %v221, 0.0
    %v290 = vmax.f32 %v224, 0.0
    %v291 = vmax.f32 %v227, 0.0
    %v292 = vmax.f32 %v230, 0.0
    %v293 = vmax.f32 %v233, 0.0
    %v294 = vmax.f32 %v236, 0.0
    %v295 = vmax.f32 %v239, 0.0
    %v296 = vmax.f32 %v242, 0.0
    %v297 = vmax.f32 %v245, 0.0
    %v298 = vmax.f32 %v248, 0.0
    %v299 = vsel %vm267, %v283, %v203
    %v300 = vsel %vm268, %v284, %v206
    %v301 = vsel %vm269, %v285, %v209
    %v302 = vsel %vm270, %v286, %v212
    %v303 = vsel %vm271, %v287, %v215
    %v304 = vsel %vm272, %v288, %v218
    %v305 = vsel %vm273, %v289, %v221
    %v306 = vsel %vm274, %v290, %v224
    %v307 = vsel %vm275, %v291, %v227
    %v308 = vsel %vm276, %v292, %v230
    %v309 = vsel %vm277, %v293, %v233
    %v310 = vsel %vm278, %v294, %v236
    %v311 = vsel %vm279, %v295, %v239
    %v312 = vsel %vm280, %v296, %v242
    %v313 = vsel %vm281, %v297, %v245
    %v314 = vsel %vm282, %v298, %v248
    %v315 = vld [vmem:[%s3] sm:$0x3]
    %v316 = vld [vmem:[%s4] sm:$0x3]
    %318 = vset.pattern.permute.xlu0 0
    %319 = vperm.xlu0 %318, %v316
    %v320 = vpop.permute.xlu0 %319
    %322 = vmatpush.msra.mxu0 %v314
    %323 = vmatpush.msra.mxu0 %v313
    %324 = vmatpush.msra.mxu0 %v312
    %325 = vmatpush.msra.mxu0 %v311
    %326 = vmatpush.msra.mxu0 %v310
    %327 = vmatpush.msra.mxu0 %v309
    %328 = vmatpush.msra.mxu0 %v308
    %329 = vmatpush.msra.mxu0 %v307
    %330 = vmatpush.msra.mxu0 %v306
    %331 = vmatpush.msra.mxu0 %v305
    %332 = vmatpush.msra.mxu0 %v304
    %333 = vmatpush.msra.mxu0 %v303
    %334 = vmatpush.msra.mxu0 %v302
    %335 = vmatpush.msra.mxu0 %v301
    %336 = vmatpush.msra.mxu0 %v300
    %337 = vmatpush.msra.mxu0 %v299
    %338 = vmatmul.f32.gmra.mxu0 %v315
    %v339 = vpop.f32.mrf.mxu0
    %v340 = vadd.f32 %v320, %v339
    %341 = vdwg.mxu0
    %vm342 = vcmask 58368
    %343 = vst.msk [vmem:[#allocation2] sm:$0x3] %vm342, %v340
    // Predicated region
    $region22: #{tpu_custom_call.1} parent=1 // pred_check
      _
    $region23: #{tpu_custom_call.1} parent=1 // pred_check_branch
      %345 = sbr.rel (0) target = $region25
    $region24: #{tpu_custom_call.1} parent=1 // pred_region
      %347 = vsyncadd [#allocation3], 0
      %s349 = sshll.u32 [#allocation2], 4
      %s350 = int_to_ptr.vmem [resolvable:$true] %s349
      %s351 = sshll.u32 %s5, 4
      %s352 = int_to_ptr.hbm [resolvable:$true] %s351
      %354 = dma.vmem_to_hbm [thread:$0]  %s350, 32, %s352, [#allocation3]
    $region25: #{tpu_custom_call.1} parent=1 // pred_fallthru
      _
    // Predicated region
    $region26: #{tpu_custom_call.1} parent=1 // pred_check
      _
    $region27: #{tpu_custom_call.1} parent=1 // pred_check_branch
      %356 = sbr.rel (0) target = $region29
    $region28: #{tpu_custom_call.1} parent=1 // pred_region
      %358 = dma.done [#allocation3], 32
    $region29: #{tpu_custom_call.1} parent=1 // pred_fallthru
      _
    %359 = vsyncpa [#allocation3], 1

</llo_original>
